<compile_context>
chip_gen: v5e
topology: v5e:2x2
jax: 0.10.0
libtpu: 0.0.40
codegen_flags: <defaults>
</compile_context>

<pallas_src>
import functools

import jax
import jax.numpy as jnp
import numpy as np
from jax import lax
from jax.experimental import pallas as pl
from jax.experimental.pallas import tpu as pltpu

FC1, FC2, FC3, FC4 = 50, 100, 100, 50
LN_EPS = 1e-5            # torch.nn.LayerNorm default
PAD = 128                # lane width of the packed parameter slabs
SUM_LANE = PAD - 1       # lane carrying the MXU-computed per-row sum
N_LAYERS = 5


def _round_up(x, m):
    return (x + m - 1) // m * m


def actor_kernel(state_ref, w_ref, v_ref, mu_ref, *, sizes):
    """Fused 5-layer [Linear -> LayerNorm -> ReLU/Tanh] MLP at full 128 lanes.

    state_ref: (TB, 128)      state zero-padded to 128 lanes.
    w_ref:     (5, 128, 128)  weights; layer i valid in [:in_i, :out_i];
                              column SUM_LANE = row-sum of the valid columns.
    v_ref:     (5, 8, 128)    rows 0/1/2 = bias / gamma / beta (zero-padded;
                              bias row's SUM_LANE entry = sum(bias)).
    mu_ref:    (TB, 128)      lane-dense output; padded lanes are exactly 0.
    """
    x = state_ref[...]                                            # (TB, 128)
    for i in range(N_LAYERS):
        out_i = sizes[i + 1]
        inv_n = 1.0 / float(out_i)
        # Uniform full-width matmul; weight streamed from the ref per layer.
        y = jnp.dot(x, w_ref[i, :, :], preferred_element_type=jnp.float32)
        y = y + v_ref[i, 0:1, :]                                  # bias (lane 127 = sum(b))
        # LayerNorm (one-pass stats). Mean comes from the MXU sum column, so
        # only the sum-of-squares cross-lane reduction hits the XLU.
        s1 = y[:, SUM_LANE:SUM_LANE + 1]                          # (TB, 1) == sum over valid lanes
        s2 = jnp.sum(y * y, axis=-1, keepdims=True) - s1 * s1     # remove sum-lane contribution
        mean = s1 * inv_n
        var = jnp.maximum(s2 * inv_n - mean * mean, 0.0)
        yn = (y - mean) * lax.rsqrt(var + LN_EPS)
        yn = yn * v_ref[i, 1:2, :] + v_ref[i, 2:3, :]             # gamma/beta (0 in padded lanes)
        x = jnp.tanh(yn) if i == N_LAYERS - 1 else jnp.maximum(yn, 0.0)
    mu_ref[...] = x


def init_actor_raw(key, state_size, action_size, std=0.0):
    """Per-layer params matching torch init_weights: Linear W ~ U(+-sqrt(6/(fan_in+fan_out))),
    bias = 0, LayerNorm gamma = 1 / beta = 0, log_std = std * ones(1, action_size)."""
    sizes = (state_size, FC1, FC2, FC3, FC4, action_size)
    Ws, bs, gs, betas = [], [], [], []
    for i in range(N_LAYERS):
        fan_in, fan_out = sizes[i], sizes[i + 1]
        key, sub = jax.random.split(key)
        bound = float(np.sqrt(6.0 / (fan_in + fan_out)))
        Ws.append(jax.random.uniform(sub, (fan_in, fan_out), jnp.float32, -bound, bound))
        bs.append(jnp.zeros((fan_out,), jnp.float32))
        gs.append(jnp.ones((fan_out,), jnp.float32))
        betas.append(jnp.zeros((fan_out,), jnp.float32))
    log_std = jnp.full((1, action_size), std, jnp.float32)
    return Ws, bs, gs, betas, log_std


def pack_actor_params(Ws, bs, gs, betas):
    """Pack per-layer params into two zero-padded slabs (2 parameter DMAs).
    Adds the MXU "sum column": weight column SUM_LANE = row-sums of the valid
    columns and bias[SUM_LANE] = sum(bias), so the LayerNorm mean falls out of
    the layer matmul."""
    w_slab = np.zeros((N_LAYERS, PAD, PAD), np.float32)
    v_slab = np.zeros((N_LAYERS, 8, PAD), np.float32)
    for i, (w, b, g, be) in enumerate(zip(Ws, bs, gs, betas)):
        w = np.asarray(w, np.float32)
        b = np.asarray(b, np.float32)
        fan_in, fan_out = w.shape
        assert fan_in <= PAD and fan_out < SUM_LANE
        w_slab[i, :fan_in, :fan_out] = w
        w_slab[i, :fan_in, SUM_LANE] = w.sum(axis=1)
        v_slab[i, 0, :fan_out] = b
        v_slab[i, 0, SUM_LANE] = b.sum()
        v_slab[i, 1, :fan_out] = np.asarray(g, np.float32)   # gamma
        v_slab[i, 2, :fan_out] = np.asarray(be, np.float32)  # beta
    return jnp.asarray(w_slab), jnp.asarray(v_slab)


@functools.partial(jax.jit, static_argnames=("action_size",))
def actor_forward(state, w_slab, v_slab, std, *, action_size):
    """Returns (mu, std) of the Normal the torch module builds, shapes
    (1, B, action_size) (torch: unsqueeze_(0) / expand_as). `std` is exp(log_std),
    precomputed outside the per-step path (state-independent)."""
    B, state_size = state.shape
    sizes = (state_size, FC1, FC2, FC3, FC4, action_size)
    assert state_size <= PAD and max(sizes[1:]) < SUM_LANE

    # Batch tile: multiple of 8 sublanes, capped at 256 rows (128 KiB f32 per
    # block -> ~0.5 MiB double-buffered; fine even on v7x's 32 MiB scoped VMEM).
    TB = min(_round_up(B, 8), 256)
    B_pad = _round_up(B, TB)
    xp = jnp.pad(state.astype(jnp.float32),
                 ((0, B_pad - B), (0, PAD - state_size)))

    param_bytes = int(w_slab.size + v_slab.size) * 4
    cost = pl.CostEstimate(
        flops=2 * B_pad * PAD * PAD * N_LAYERS,
        transcendentals=B_pad * (PAD + N_LAYERS),
        bytes_accessed=2 * B_pad * PAD * 4 + param_bytes)

    mu_pad = pl.pallas_call(
        functools.partial(actor_kernel, sizes=sizes),
        out_shape=jax.ShapeDtypeStruct((B_pad, PAD), jnp.float32),
        grid=(B_pad // TB,),
        in_specs=[
            pl.BlockSpec((TB, PAD), lambda b: (b, 0)),                 # state tile
            pl.BlockSpec((N_LAYERS, PAD, PAD), lambda b: (0, 0, 0)),   # weights (resident)
            pl.BlockSpec((N_LAYERS, 8, PAD), lambda b: (0, 0, 0)),     # bias/gamma/beta (resident)
        ],
        out_specs=pl.BlockSpec((TB, PAD), lambda b: (b, 0)),
        compiler_params=pltpu.CompilerParams(dimension_semantics=("parallel",)),
        cost_estimate=cost,
    )(xp, w_slab, v_slab)

    mu = mu_pad[:B, :action_size][None, ...]                           # (1, B, A)
    std_full = jnp.broadcast_to(std, mu.shape)
    return mu, std_full


if __name__ == "__main__":
    state_size, action_size = 16, 4
    key = jax.random.PRNGKey(0)
    pkey, vkey, skey, skey2 = jax.random.split(key, 4)

    Ws, bs, gs, betas, log_std = init_actor_raw(pkey, state_size, action_size, std=0.0)

    # Torch init leaves bias=0 / gamma=1 / beta=0; perturb them (logical widths
    # only) so those paths are exercised.  Packing recomputes the sum-lane
    # entries, so raw params and slabs stay consistent.
    for i in range(N_LAYERS):
        out_i = Ws[i].shape[1]
        vkey, k1, k2, k3 = jax.random.split(vkey, 4)
        bs[i] = jax.random.uniform(k1, (out_i,), jnp.float32, -0.1, 0.1)
        gs[i] = jax.random.uniform(k2, (out_i,), jnp.float32, 0.8, 1.2)
        betas[i] = jax.random.uniform(k3, (out_i,), jnp.float32, -0.1, 0.1)

    w_slab, v_slab = pack_actor_params(Ws, bs, gs, betas)
    std = jnp.exp(log_std)   # state-independent -> hoisted out of the step path

    def ref_forward(x):
        """Pure-JAX reference: unpacked params, two-pass LayerNorm."""
        h = x
        for i in range(N_LAYERS):
            y = h @ Ws[i] + bs[i]
            m = y.mean(-1, keepdims=True)
            v = ((y - m) ** 2).mean(-1, keepdims=True)
            y = (y - m) / jnp.sqrt(v + LN_EPS) * gs[i] + betas[i]
            h = jnp.tanh(y) if i == N_LAYERS - 1 else jnp.maximum(y, 0.0)
        mu_r = h[None]
        return mu_r, jnp.broadcast_to(std, mu_r.shape)

    def check(batch, seed_key):
        state = jax.random.normal(seed_key, (batch, state_size), jnp.float32)
        mu, std_out = actor_forward(state, w_slab, v_slab, std, action_size=action_size)
        jax.block_until_ready((mu, std_out))
        mu_ref, std_ref = ref_forward(state)
        assert mu.shape == (1, batch, action_size)
        assert std_out.shape == (1, batch, action_size)
        np.testing.assert_allclose(np.asarray(mu), np.asarray(mu_ref), atol=5e-5, rtol=5e-5)
        np.testing.assert_allclose(np.asarray(std_out), np.asarray(std_ref), atol=1e-6, rtol=1e-6)

    check(8, skey)      # small batch: single-block grid
    check(300, skey2)   # deployed-size batch: multi-block parallel grid (ragged pad)

    # TODO(synk): torch returns a Normal distribution object; sampling/log_prob
    # are host-side glue, so the kernel returns the distribution parameters.
    print("KERNEL_OK")
</pallas_src>

<mosaic_0001>
module attributes {stable_mosaic.version = 11 : i64} {
  func.func @actor_kernel(%arg0: i32, %arg1: memref<8x128xf32, #tpu.memory_space<vmem>>, %arg2: memref<5x128x128xf32, #tpu.memory_space<vmem>>, %arg3: memref<5x8x128xf32, #tpu.memory_space<vmem>>, %arg4: memref<8x128xf32, #tpu.memory_space<vmem>>) attributes {dimension_semantics = [#tpu.dimension_semantics<parallel>], iteration_bounds = array<i64: 1>, scalar_prefetch = 0 : i64, scratch_operands = 0 : i64, tpu.core_type = #tpu.core_type<tc>, window_params = [{transform_indices = @transform_0, window_bounds = array<i64: 8, 128>}, {pipeline_mode = #tpu.pipeline_mode<synchronous>, transform_indices = @transform_1, window_bounds = array<i64: 5, 128, 128>}, {pipeline_mode = #tpu.pipeline_mode<synchronous>, transform_indices = @transform_2, window_bounds = array<i64: 5, 8, 128>}, {transform_indices = @transform_3, window_bounds = array<i64: 8, 128>}]} {
    %c0 = arith.constant 0 : index
    %c0_0 = arith.constant 0 : index
    %0 = vector.load %arg1[%c0, %c0_0] : memref<8x128xf32, #tpu.memory_space<vmem>>, vector<8x128xf32>
    %c0_1 = arith.constant 0 : index
    %c0_2 = arith.constant 0 : index
    %c0_3 = arith.constant 0 : index
    %1 = vector.load %arg2[%c0_1, %c0_2, %c0_3] : memref<5x128x128xf32, #tpu.memory_space<vmem>>, vector<1x128x128xf32>
    %2 = vector.shape_cast %1 : vector<1x128x128xf32> to vector<128x128xf32>
    %cst = arith.constant dense<0.000000e+00> : vector<8x128xf32>
    %3 = tpu.matmul %0, %2, %cst {dimension_numbers = #tpu.dot_dimension_numbers<[1], [0], [0], [1], [0, 0, 1, 1], [], []>} : vector<8x128xf32>, vector<128x128xf32>, vector<8x128xf32> -> vector<8x128xf32>
    %c0_4 = arith.constant 0 : index
    %c0_5 = arith.constant 0 : index
    %c0_6 = arith.constant 0 : index
    %4 = vector.load %arg3[%c0_4, %c0_5, %c0_6] : memref<5x8x128xf32, #tpu.memory_space<vmem>>, vector<1x1x128xf32>
    %5 = vector.shape_cast %4 : vector<1x1x128xf32> to vector<1x128xf32>
    %6 = vector.broadcast %5 : vector<1x128xf32> to vector<8x128xf32>
    %7 = arith.addf %3, %6 : vector<8x128xf32>
    %8 = vector.extract_strided_slice %7 {offsets = [0, 127], sizes = [8, 1], strides = [1, 1]} : vector<8x128xf32> to vector<8x1xf32>
    %9 = arith.mulf %7, %7 : vector<8x128xf32>
    %cst_7 = arith.constant dense<0.000000e+00> : vector<8xf32>
    %10 = vector.multi_reduction <add>, %9, %cst_7 [1] : vector<8x128xf32> to vector<8xf32>
    %11 = vector.shape_cast %10 : vector<8xf32> to vector<8x1xf32>
    %12 = arith.mulf %8, %8 : vector<8x1xf32>
    %13 = arith.subf %11, %12 : vector<8x1xf32>
    %cst_8 = arith.constant 2.000000e-02 : f32
    %14 = vector.broadcast %cst_8 : f32 to vector<8x1xf32>
    %15 = arith.mulf %8, %14 : vector<8x1xf32>
    %cst_9 = arith.constant 2.000000e-02 : f32
    %16 = vector.broadcast %cst_9 : f32 to vector<8x1xf32>
    %17 = arith.mulf %13, %16 : vector<8x1xf32>
    %18 = arith.mulf %15, %15 : vector<8x1xf32>
    %19 = arith.subf %17, %18 : vector<8x1xf32>
    %cst_10 = arith.constant 0.000000e+00 : f32
    %20 = vector.broadcast %cst_10 : f32 to vector<8x1xf32>
    %21 = arith.maximumf %19, %20 : vector<8x1xf32>
    %22 = vector.broadcast %15 : vector<8x1xf32> to vector<8x128xf32>
    %23 = arith.subf %7, %22 : vector<8x128xf32>
    %cst_11 = arith.constant 9.99999974E-6 : f32
    %24 = vector.broadcast %cst_11 : f32 to vector<8x1xf32>
    %25 = arith.addf %21, %24 : vector<8x1xf32>
    %26 = math.rsqrt %25 : vector<8x1xf32>
    %27 = vector.broadcast %26 : vector<8x1xf32> to vector<8x128xf32>
    %28 = arith.mulf %23, %27 : vector<8x128xf32>
    %c0_12 = arith.constant 0 : index
    %c1 = arith.constant 1 : index
    %c0_13 = arith.constant 0 : index
    %29 = vector.load %arg3[%c0_12, %c1, %c0_13] : memref<5x8x128xf32, #tpu.memory_space<vmem>>, vector<1x1x128xf32>
    %30 = vector.shape_cast %29 : vector<1x1x128xf32> to vector<1x128xf32>
    %31 = vector.broadcast %30 : vector<1x128xf32> to vector<8x128xf32>
    %32 = arith.mulf %28, %31 : vector<8x128xf32>
    %c0_14 = arith.constant 0 : index
    %c2 = arith.constant 2 : index
    %c0_15 = arith.constant 0 : index
    %33 = vector.load %arg3[%c0_14, %c2, %c0_15] : memref<5x8x128xf32, #tpu.memory_space<vmem>>, vector<1x1x128xf32>
    %34 = vector.shape_cast %33 : vector<1x1x128xf32> to vector<1x128xf32>
    %35 = vector.broadcast %34 : vector<1x128xf32> to vector<8x128xf32>
    %36 = arith.addf %32, %35 : vector<8x128xf32>
    %cst_16 = arith.constant 0.000000e+00 : f32
    %37 = vector.broadcast %cst_16 : f32 to vector<8x128xf32>
    %38 = arith.maximumf %36, %37 : vector<8x128xf32>
    %c1_17 = arith.constant 1 : index
    %c0_18 = arith.constant 0 : index
    %c0_19 = arith.constant 0 : index
    %39 = vector.load %arg2[%c1_17, %c0_18, %c0_19] : memref<5x128x128xf32, #tpu.memory_space<vmem>>, vector<1x128x128xf32>
    %40 = vector.shape_cast %39 : vector<1x128x128xf32> to vector<128x128xf32>
    %cst_20 = arith.constant dense<0.000000e+00> : vector<8x128xf32>
    %41 = tpu.matmul %38, %40, %cst_20 {dimension_numbers = #tpu.dot_dimension_numbers<[1], [0], [0], [1], [0, 0, 1, 1], [], []>} : vector<8x128xf32>, vector<128x128xf32>, vector<8x128xf32> -> vector<8x128xf32>
    %c1_21 = arith.constant 1 : index
    %c0_22 = arith.constant 0 : index
    %c0_23 = arith.constant 0 : index
    %42 = vector.load %arg3[%c1_21, %c0_22, %c0_23] : memref<5x8x128xf32, #tpu.memory_space<vmem>>, vector<1x1x128xf32>
    %43 = vector.shape_cast %42 : vector<1x1x128xf32> to vector<1x128xf32>
    %44 = vector.broadcast %43 : vector<1x128xf32> to vector<8x128xf32>
    %45 = arith.addf %41, %44 : vector<8x128xf32>
    %46 = vector.extract_strided_slice %45 {offsets = [0, 127], sizes = [8, 1], strides = [1, 1]} : vector<8x128xf32> to vector<8x1xf32>
    %47 = arith.mulf %45, %45 : vector<8x128xf32>
    %cst_24 = arith.constant dense<0.000000e+00> : vector<8xf32>
    %48 = vector.multi_reduction <add>, %47, %cst_24 [1] : vector<8x128xf32> to vector<8xf32>
    %49 = vector.shape_cast %48 : vector<8xf32> to vector<8x1xf32>
    %50 = arith.mulf %46, %46 : vector<8x1xf32>
    %51 = arith.subf %49, %50 : vector<8x1xf32>
    %cst_25 = arith.constant 0.00999999977 : f32
    %52 = vector.broadcast %cst_25 : f32 to vector<8x1xf32>
    %53 = arith.mulf %46, %52 : vector<8x1xf32>
    %cst_26 = arith.constant 0.00999999977 : f32
    %54 = vector.broadcast %cst_26 : f32 to vector<8x1xf32>
    %55 = arith.mulf %51, %54 : vector<8x1xf32>
    %56 = arith.mulf %53, %53 : vector<8x1xf32>
    %57 = arith.subf %55, %56 : vector<8x1xf32>
    %cst_27 = arith.constant 0.000000e+00 : f32
    %58 = vector.broadcast %cst_27 : f32 to vector<8x1xf32>
    %59 = arith.maximumf %57, %58 : vector<8x1xf32>
    %60 = vector.broadcast %53 : vector<8x1xf32> to vector<8x128xf32>
    %61 = arith.subf %45, %60 : vector<8x128xf32>
    %cst_28 = arith.constant 9.99999974E-6 : f32
    %62 = vector.broadcast %cst_28 : f32 to vector<8x1xf32>
    %63 = arith.addf %59, %62 : vector<8x1xf32>
    %64 = math.rsqrt %63 : vector<8x1xf32>
    %65 = vector.broadcast %64 : vector<8x1xf32> to vector<8x128xf32>
    %66 = arith.mulf %61, %65 : vector<8x128xf32>
    %c1_29 = arith.constant 1 : index
    %c1_30 = arith.constant 1 : index
    %c0_31 = arith.constant 0 : index
    %67 = vector.load %arg3[%c1_29, %c1_30, %c0_31] : memref<5x8x128xf32, #tpu.memory_space<vmem>>, vector<1x1x128xf32>
    %68 = vector.shape_cast %67 : vector<1x1x128xf32> to vector<1x128xf32>
    %69 = vector.broadcast %68 : vector<1x128xf32> to vector<8x128xf32>
    %70 = arith.mulf %66, %69 : vector<8x128xf32>
    %c1_32 = arith.constant 1 : index
    %c2_33 = arith.constant 2 : index
    %c0_34 = arith.constant 0 : index
    %71 = vector.load %arg3[%c1_32, %c2_33, %c0_34] : memref<5x8x128xf32, #tpu.memory_space<vmem>>, vector<1x1x128xf32>
    %72 = vector.shape_cast %71 : vector<1x1x128xf32> to vector<1x128xf32>
    %73 = vector.broadcast %72 : vector<1x128xf32> to vector<8x128xf32>
    %74 = arith.addf %70, %73 : vector<8x128xf32>
    %cst_35 = arith.constant 0.000000e+00 : f32
    %75 = vector.broadcast %cst_35 : f32 to vector<8x128xf32>
    %76 = arith.maximumf %74, %75 : vector<8x128xf32>
    %c2_36 = arith.constant 2 : index
    %c0_37 = arith.constant 0 : index
    %c0_38 = arith.constant 0 : index
    %77 = vector.load %arg2[%c2_36, %c0_37, %c0_38] : memref<5x128x128xf32, #tpu.memory_space<vmem>>, vector<1x128x128xf32>
    %78 = vector.shape_cast %77 : vector<1x128x128xf32> to vector<128x128xf32>
    %cst_39 = arith.constant dense<0.000000e+00> : vector<8x128xf32>
    %79 = tpu.matmul %76, %78, %cst_39 {dimension_numbers = #tpu.dot_dimension_numbers<[1], [0], [0], [1], [0, 0, 1, 1], [], []>} : vector<8x128xf32>, vector<128x128xf32>, vector<8x128xf32> -> vector<8x128xf32>
    %c2_40 = arith.constant 2 : index
    %c0_41 = arith.constant 0 : index
    %c0_42 = arith.constant 0 : index
    %80 = vector.load %arg3[%c2_40, %c0_41, %c0_42] : memref<5x8x128xf32, #tpu.memory_space<vmem>>, vector<1x1x128xf32>
    %81 = vector.shape_cast %80 : vector<1x1x128xf32> to vector<1x128xf32>
    %82 = vector.broadcast %81 : vector<1x128xf32> to vector<8x128xf32>
    %83 = arith.addf %79, %82 : vector<8x128xf32>
    %84 = vector.extract_strided_slice %83 {offsets = [0, 127], sizes = [8, 1], strides = [1, 1]} : vector<8x128xf32> to vector<8x1xf32>
    %85 = arith.mulf %83, %83 : vector<8x128xf32>
    %cst_43 = arith.constant dense<0.000000e+00> : vector<8xf32>
    %86 = vector.multi_reduction <add>, %85, %cst_43 [1] : vector<8x128xf32> to vector<8xf32>
    %87 = vector.shape_cast %86 : vector<8xf32> to vector<8x1xf32>
    %88 = arith.mulf %84, %84 : vector<8x1xf32>
    %89 = arith.subf %87, %88 : vector<8x1xf32>
    %cst_44 = arith.constant 0.00999999977 : f32
    %90 = vector.broadcast %cst_44 : f32 to vector<8x1xf32>
    %91 = arith.mulf %84, %90 : vector<8x1xf32>
    %cst_45 = arith.constant 0.00999999977 : f32
    %92 = vector.broadcast %cst_45 : f32 to vector<8x1xf32>
    %93 = arith.mulf %89, %92 : vector<8x1xf32>
    %94 = arith.mulf %91, %91 : vector<8x1xf32>
    %95 = arith.subf %93, %94 : vector<8x1xf32>
    %cst_46 = arith.constant 0.000000e+00 : f32
    %96 = vector.broadcast %cst_46 : f32 to vector<8x1xf32>
    %97 = arith.maximumf %95, %96 : vector<8x1xf32>
    %98 = vector.broadcast %91 : vector<8x1xf32> to vector<8x128xf32>
    %99 = arith.subf %83, %98 : vector<8x128xf32>
    %cst_47 = arith.constant 9.99999974E-6 : f32
    %100 = vector.broadcast %cst_47 : f32 to vector<8x1xf32>
    %101 = arith.addf %97, %100 : vector<8x1xf32>
    %102 = math.rsqrt %101 : vector<8x1xf32>
    %103 = vector.broadcast %102 : vector<8x1xf32> to vector<8x128xf32>
    %104 = arith.mulf %99, %103 : vector<8x128xf32>
    %c2_48 = arith.constant 2 : index
    %c1_49 = arith.constant 1 : index
    %c0_50 = arith.constant 0 : index
    %105 = vector.load %arg3[%c2_48, %c1_49, %c0_50] : memref<5x8x128xf32, #tpu.memory_space<vmem>>, vector<1x1x128xf32>
    %106 = vector.shape_cast %105 : vector<1x1x128xf32> to vector<1x128xf32>
    %107 = vector.broadcast %106 : vector<1x128xf32> to vector<8x128xf32>
    %108 = arith.mulf %104, %107 : vector<8x128xf32>
    %c2_51 = arith.constant 2 : index
    %c2_52 = arith.constant 2 : index
    %c0_53 = arith.constant 0 : index
    %109 = vector.load %arg3[%c2_51, %c2_52, %c0_53] : memref<5x8x128xf32, #tpu.memory_space<vmem>>, vector<1x1x128xf32>
    %110 = vector.shape_cast %109 : vector<1x1x128xf32> to vector<1x128xf32>
    %111 = vector.broadcast %110 : vector<1x128xf32> to vector<8x128xf32>
    %112 = arith.addf %108, %111 : vector<8x128xf32>
    %cst_54 = arith.constant 0.000000e+00 : f32
    %113 = vector.broadcast %cst_54 : f32 to vector<8x128xf32>
    %114 = arith.maximumf %112, %113 : vector<8x128xf32>
    %c3 = arith.constant 3 : index
    %c0_55 = arith.constant 0 : index
    %c0_56 = arith.constant 0 : index
    %115 = vector.load %arg2[%c3, %c0_55, %c0_56] : memref<5x128x128xf32, #tpu.memory_space<vmem>>, vector<1x128x128xf32>
    %116 = vector.shape_cast %115 : vector<1x128x128xf32> to vector<128x128xf32>
    %cst_57 = arith.constant dense<0.000000e+00> : vector<8x128xf32>
    %117 = tpu.matmul %114, %116, %cst_57 {dimension_numbers = #tpu.dot_dimension_numbers<[1], [0], [0], [1], [0, 0, 1, 1], [], []>} : vector<8x128xf32>, vector<128x128xf32>, vector<8x128xf32> -> vector<8x128xf32>
    %c3_58 = arith.constant 3 : index
    %c0_59 = arith.constant 0 : index
    %c0_60 = arith.constant 0 : index
    %118 = vector.load %arg3[%c3_58, %c0_59, %c0_60] : memref<5x8x128xf32, #tpu.memory_space<vmem>>, vector<1x1x128xf32>
    %119 = vector.shape_cast %118 : vector<1x1x128xf32> to vector<1x128xf32>
    %120 = vector.broadcast %119 : vector<1x128xf32> to vector<8x128xf32>
    %121 = arith.addf %117, %120 : vector<8x128xf32>
    %122 = vector.extract_strided_slice %121 {offsets = [0, 127], sizes = [8, 1], strides = [1, 1]} : vector<8x128xf32> to vector<8x1xf32>
    %123 = arith.mulf %121, %121 : vector<8x128xf32>
    %cst_61 = arith.constant dense<0.000000e+00> : vector<8xf32>
    %124 = vector.multi_reduction <add>, %123, %cst_61 [1] : vector<8x128xf32> to vector<8xf32>
    %125 = vector.shape_cast %124 : vector<8xf32> to vector<8x1xf32>
    %126 = arith.mulf %122, %122 : vector<8x1xf32>
    %127 = arith.subf %125, %126 : vector<8x1xf32>
    %cst_62 = arith.constant 2.000000e-02 : f32
    %128 = vector.broadcast %cst_62 : f32 to vector<8x1xf32>
    %129 = arith.mulf %122, %128 : vector<8x1xf32>
    %cst_63 = arith.constant 2.000000e-02 : f32
    %130 = vector.broadcast %cst_63 : f32 to vector<8x1xf32>
    %131 = arith.mulf %127, %130 : vector<8x1xf32>
    %132 = arith.mulf %129, %129 : vector<8x1xf32>
    %133 = arith.subf %131, %132 : vector<8x1xf32>
    %cst_64 = arith.constant 0.000000e+00 : f32
    %134 = vector.broadcast %cst_64 : f32 to vector<8x1xf32>
    %135 = arith.maximumf %133, %134 : vector<8x1xf32>
    %136 = vector.broadcast %129 : vector<8x1xf32> to vector<8x128xf32>
    %137 = arith.subf %121, %136 : vector<8x128xf32>
    %cst_65 = arith.constant 9.99999974E-6 : f32
    %138 = vector.broadcast %cst_65 : f32 to vector<8x1xf32>
    %139 = arith.addf %135, %138 : vector<8x1xf32>
    %140 = math.rsqrt %139 : vector<8x1xf32>
    %141 = vector.broadcast %140 : vector<8x1xf32> to vector<8x128xf32>
    %142 = arith.mulf %137, %141 : vector<8x128xf32>
    %c3_66 = arith.constant 3 : index
    %c1_67 = arith.constant 1 : index
    %c0_68 = arith.constant 0 : index
    %143 = vector.load %arg3[%c3_66, %c1_67, %c0_68] : memref<5x8x128xf32, #tpu.memory_space<vmem>>, vector<1x1x128xf32>
    %144 = vector.shape_cast %143 : vector<1x1x128xf32> to vector<1x128xf32>
    %145 = vector.broadcast %144 : vector<1x128xf32> to vector<8x128xf32>
    %146 = arith.mulf %142, %145 : vector<8x128xf32>
    %c3_69 = arith.constant 3 : index
    %c2_70 = arith.constant 2 : index
    %c0_71 = arith.constant 0 : index
    %147 = vector.load %arg3[%c3_69, %c2_70, %c0_71] : memref<5x8x128xf32, #tpu.memory_space<vmem>>, vector<1x1x128xf32>
    %148 = vector.shape_cast %147 : vector<1x1x128xf32> to vector<1x128xf32>
    %149 = vector.broadcast %148 : vector<1x128xf32> to vector<8x128xf32>
    %150 = arith.addf %146, %149 : vector<8x128xf32>
    %cst_72 = arith.constant 0.000000e+00 : f32
    %151 = vector.broadcast %cst_72 : f32 to vector<8x128xf32>
    %152 = arith.maximumf %150, %151 : vector<8x128xf32>
    %c4 = arith.constant 4 : index
    %c0_73 = arith.constant 0 : index
    %c0_74 = arith.constant 0 : index
    %153 = vector.load %arg2[%c4, %c0_73, %c0_74] : memref<5x128x128xf32, #tpu.memory_space<vmem>>, vector<1x128x128xf32>
    %154 = vector.shape_cast %153 : vector<1x128x128xf32> to vector<128x128xf32>
    %cst_75 = arith.constant dense<0.000000e+00> : vector<8x128xf32>
    %155 = tpu.matmul %152, %154, %cst_75 {dimension_numbers = #tpu.dot_dimension_numbers<[1], [0], [0], [1], [0, 0, 1, 1], [], []>} : vector<8x128xf32>, vector<128x128xf32>, vector<8x128xf32> -> vector<8x128xf32>
    %c4_76 = arith.constant 4 : index
    %c0_77 = arith.constant 0 : index
    %c0_78 = arith.constant 0 : index
    %156 = vector.load %arg3[%c4_76, %c0_77, %c0_78] : memref<5x8x128xf32, #tpu.memory_space<vmem>>, vector<1x1x128xf32>
    %157 = vector.shape_cast %156 : vector<1x1x128xf32> to vector<1x128xf32>
    %158 = vector.broadcast %157 : vector<1x128xf32> to vector<8x128xf32>
    %159 = arith.addf %155, %158 : vector<8x128xf32>
    %160 = vector.extract_strided_slice %159 {offsets = [0, 127], sizes = [8, 1], strides = [1, 1]} : vector<8x128xf32> to vector<8x1xf32>
    %161 = arith.mulf %159, %159 : vector<8x128xf32>
    %cst_79 = arith.constant dense<0.000000e+00> : vector<8xf32>
    %162 = vector.multi_reduction <add>, %161, %cst_79 [1] : vector<8x128xf32> to vector<8xf32>
    %163 = vector.shape_cast %162 : vector<8xf32> to vector<8x1xf32>
    %164 = arith.mulf %160, %160 : vector<8x1xf32>
    %165 = arith.subf %163, %164 : vector<8x1xf32>
    %cst_80 = arith.constant 2.500000e-01 : f32
    %166 = vector.broadcast %cst_80 : f32 to vector<8x1xf32>
    %167 = arith.mulf %160, %166 : vector<8x1xf32>
    %cst_81 = arith.constant 2.500000e-01 : f32
    %168 = vector.broadcast %cst_81 : f32 to vector<8x1xf32>
    %169 = arith.mulf %165, %168 : vector<8x1xf32>
    %170 = arith.mulf %167, %167 : vector<8x1xf32>
    %171 = arith.subf %169, %170 : vector<8x1xf32>
    %cst_82 = arith.constant 0.000000e+00 : f32
    %172 = vector.broadcast %cst_82 : f32 to vector<8x1xf32>
    %173 = arith.maximumf %171, %172 : vector<8x1xf32>
    %174 = vector.broadcast %167 : vector<8x1xf32> to vector<8x128xf32>
    %175 = arith.subf %159, %174 : vector<8x128xf32>
    %cst_83 = arith.constant 9.99999974E-6 : f32
    %176 = vector.broadcast %cst_83 : f32 to vector<8x1xf32>
    %177 = arith.addf %173, %176 : vector<8x1xf32>
    %178 = math.rsqrt %177 : vector<8x1xf32>
    %179 = vector.broadcast %178 : vector<8x1xf32> to vector<8x128xf32>
    %180 = arith.mulf %175, %179 : vector<8x128xf32>
    %c4_84 = arith.constant 4 : index
    %c1_85 = arith.constant 1 : index
    %c0_86 = arith.constant 0 : index
    %181 = vector.load %arg3[%c4_84, %c1_85, %c0_86] : memref<5x8x128xf32, #tpu.memory_space<vmem>>, vector<1x1x128xf32>
    %182 = vector.shape_cast %181 : vector<1x1x128xf32> to vector<1x128xf32>
    %183 = vector.broadcast %182 : vector<1x128xf32> to vector<8x128xf32>
    %184 = arith.mulf %180, %183 : vector<8x128xf32>
    %c4_87 = arith.constant 4 : index
    %c2_88 = arith.constant 2 : index
    %c0_89 = arith.constant 0 : index
    %185 = vector.load %arg3[%c4_87, %c2_88, %c0_89] : memref<5x8x128xf32, #tpu.memory_space<vmem>>, vector<1x1x128xf32>
    %186 = vector.shape_cast %185 : vector<1x1x128xf32> to vector<1x128xf32>
    %187 = vector.broadcast %186 : vector<1x128xf32> to vector<8x128xf32>
    %188 = arith.addf %184, %187 : vector<8x128xf32>
    %189 = math.tanh %188 : vector<8x128xf32>
    %c0_90 = arith.constant 0 : index
    %c0_91 = arith.constant 0 : index
    %190 = vector.load %arg4[%c0_90, %c0_91] : memref<8x128xf32, #tpu.memory_space<vmem>>, vector<8x128xf32>
    tpu.vector_store %arg4[%c0_90, %c0_91], %189 {strides = array<i32>} : memref<8x128xf32, #tpu.memory_space<vmem>>, vector<8x128xf32>,
    return
  }
  func.func @transform_0(%arg0: i32) -> (i32, i32) {
    %c0_i32 = arith.constant 0 : i32
    %c0_i32_0 = arith.constant 0 : i32
    return %arg0, %c0_i32 : i32, i32
  }
  func.func @transform_1(%arg0: i32) -> (i32, i32, i32) {
    %c0_i32 = arith.constant 0 : i32
    %c0_i32_0 = arith.constant 0 : i32
    %c0_i32_1 = arith.constant 0 : i32
    %c0_i32_2 = arith.constant 0 : i32
    return %c0_i32, %c0_i32_0, %c0_i32_1 : i32, i32, i32
  }
  func.func @transform_2(%arg0: i32) -> (i32, i32, i32) {
    %c0_i32 = arith.constant 0 : i32
    %c0_i32_0 = arith.constant 0 : i32
    %c0_i32_1 = arith.constant 0 : i32
    %c0_i32_2 = arith.constant 0 : i32
    return %c0_i32, %c0_i32_0, %c0_i32_1 : i32, i32, i32
  }
  func.func @transform_3(%arg0: i32) -> (i32, i32) {
    %c0_i32 = arith.constant 0 : i32
    %c0_i32_0 = arith.constant 0 : i32
    return %arg0, %c0_i32 : i32, i32
  }
}

</mosaic_0001>

<llo_original>
// kernel: actor_forward.1
$region0: #{actor_forward.1}
  #allocation0 [shape = 'u32[]', space=smem, size = 0x4, offset = 0x4, fixed_abs, tag = 'smem constant byte address 0x4 - core index']
  #allocation1 [shape = 'u32[72,128]{1,0:T(1,128)}', space=vmem, size = 0x9000, scoped, tag = 'internal scratch']
  %s0 = inlined_call_operand.vmem [shape: f32[8,128], index: 0, kind: input, shape index: {}]
  %s1 = inlined_call_operand.hbm [shape: f32[5,128,128], index: 1, kind: input, shape index: {}]
  %s2 = inlined_call_operand.hbm [shape: f32[5,8,128], index: 2, kind: input, shape index: {}]
  %s3 = inlined_call_operand.vmem [shape: f32[8,128], index: 3, kind: output, shape index: {}]
  %s4 = sld [smem:[#allocation0]]
  $region30: #{actor_forward.1} parent=0
    _
  %s6 = ssub.s32 1, %s4
  %s7 = scalar_select 0, %s6, %s4
  $region1: #{actor_forward.1} parent=0
    #allocation2 [shape = 'u8[327680]{0}', space=vmem, size = 0x50000, scoped, tag = 'input window, operand 1, single buffered']
    #allocation3 [shape = 's32[1]{0}', space=sflag, size = 0x4, scoped, tag = 'scoped memory for actor_forward.1']
    #allocation4 [shape = 'u8[20480]{0}', space=vmem, size = 0x5000, scoped, tag = 'input window, operand 2, single buffered']
    #allocation5 [shape = 's32[1]{0}', space=sflag, size = 0x4, scoped, tag = 'scoped memory for actor_forward.1']
    %8 = vsyncpa [#allocation3], 0
    %9 = vsyncpa [#allocation5], 0
    // Predicated region
    $region2: #{actor_forward.1} parent=1 // pred_check
      _
    $region3: #{actor_forward.1} parent=1 // pred_check_branch
      %11 = sbr.rel (0) target = $region5
    $region4: #{actor_forward.1} parent=1 // pred_region
      _
    $region5: #{actor_forward.1} parent=1 // pred_fallthru
      _
    // Predicated region
    $region6: #{actor_forward.1} parent=1 // pred_check
      _
    $region7: #{actor_forward.1} parent=1 // pred_check_branch
      %13 = sbr.rel (0) target = $region9
    $region8: #{actor_forward.1} parent=1 // pred_region
      %15 = vsyncadd [#allocation3], 0
      %s16 = sshll.u32 %s1, 4
      %s17 = int_to_ptr.hbm [resolvable:$true] %s16
      %s18 = sshll.u32 [#allocation2], 4
      %s19 = int_to_ptr.vmem [resolvable:$true] %s18
      %24 = dma.hbm_to_vmem [thread:$0]  %s17, 10240, %s19, [#allocation3], 128, 128, 8
    $region9: #{actor_forward.1} parent=1 // pred_fallthru
      _
    // Predicated region
    $region10: #{actor_forward.1} parent=1 // pred_check
      _
    $region11: #{actor_forward.1} parent=1 // pred_check_branch
      %26 = sbr.rel (0) target = $region13
    $region12: #{actor_forward.1} parent=1 // pred_region
      %28 = vsyncadd [#allocation5], 0
      %s29 = sshll.u32 %s2, 4
      %s30 = int_to_ptr.hbm [resolvable:$true] %s29
      %s31 = sshll.u32 [#allocation4], 4
      %s32 = int_to_ptr.vmem [resolvable:$true] %s31
      %37 = dma.hbm_to_vmem [thread:$0]  %s30, 640, %s32, [#allocation5], 128, 128, 8
    $region13: #{actor_forward.1} parent=1 // pred_fallthru
      _
    // Predicated region
    $region14: #{actor_forward.1} parent=1 // pred_check
      _
    $region15: #{actor_forward.1} parent=1 // pred_check_branch
      %39 = sbr.rel (0) target = $region17
    $region16: #{actor_forward.1} parent=1 // pred_region
      %41 = dma.done [#allocation3], 10240
    $region17: #{actor_forward.1} parent=1 // pred_fallthru
      _
    // Predicated region
    $region18: #{actor_forward.1} parent=1 // pred_check
      _
    $region19: #{actor_forward.1} parent=1 // pred_check_branch
      %43 = sbr.rel (0) target = $region21
    $region20: #{actor_forward.1} parent=1 // pred_region
      %45 = dma.done [#allocation5], 640
    $region21: #{actor_forward.1} parent=1 // pred_fallthru
      _
    %v46 = vld [vmem:[%s0] sm:$0xff]
    %v47 = vld [vmem:[#allocation2] sm:$0xff]
    %v48 = vld [vmem:[#allocation2 + $0x8] sm:$0xff]
    %v49 = vld [vmem:[#allocation2 + $0x10] sm:$0xff]
    %v50 = vld [vmem:[#allocation2 + $0x18] sm:$0xff]
    %v51 = vld [vmem:[#allocation2 + $0x20] sm:$0xff]
    %v52 = vld [vmem:[#allocation2 + $0x28] sm:$0xff]
    %v53 = vld [vmem:[#allocation2 + $0x30] sm:$0xff]
    %v54 = vld [vmem:[#allocation2 + $0x38] sm:$0xff]
    %v55 = vld [vmem:[#allocation2 + $0x40] sm:$0xff]
    %v56 = vld [vmem:[#allocation2 + $0x48] sm:$0xff]
    %v57 = vld [vmem:[#allocation2 + $0x50] sm:$0xff]
    %v58 = vld [vmem:[#allocation2 + $0x58] sm:$0xff]
    %v59 = vld [vmem:[#allocation2 + $0x60] sm:$0xff]
    %v60 = vld [vmem:[#allocation2 + $0x68] sm:$0xff]
    %v61 = vld [vmem:[#allocation2 + $0x70] sm:$0xff]
    %v62 = vld [vmem:[#allocation2 + $0x78] sm:$0xff]
    %v63 = vld [vmem:[#allocation4] sm:$0x1]
    %v64 = vperm.slane %v63, 0
    %65 = vmatpush.msra.mxu0 %v62
    %66 = vmatpush.msra.mxu0 %v61
    %67 = vmatpush.msra.mxu0 %v60
    %68 = vmatpush.msra.mxu0 %v59
    %69 = vmatpush.msra.mxu0 %v58
    %70 = vmatpush.msra.mxu0 %v57
    %71 = vmatpush.msra.mxu0 %v56
    %72 = vmatpush.msra.mxu0 %v55
    %73 = vmatpush.msra.mxu0 %v54
    %74 = vmatpush.msra.mxu0 %v53
    %75 = vmatpush.msra.mxu0 %v52
    %76 = vmatpush.msra.mxu0 %v51
    %77 = vmatpush.msra.mxu0 %v50
    %78 = vmatpush.msra.mxu0 %v49
    %79 = vmatpush.msra.mxu0 %v48
    %80 = vmatpush.msra.mxu0 %v47
    %81 = vmatmul.f32.gmra.mxu0 %v46
    %v82 = vpop.f32.mrf.mxu0
    %v83 = vadd.f32 %v64, %v82
    %84 = vdwg.mxu0
    %v85 = vmul.f32 %v83, %v83
    %86 = vadd.xlane.f32.xlu0 %v85
    %v87 = vpop.xlane.xlu0 %86
    %v88 = vsub.f32 %v87, %v85
    %v89 = vmul.f32 %v83, 0.02
    %v90 = vmul.f32 %v88, 0.02
    %v91 = vmul.f32 %v89, %v89
    %v92 = vsub.f32 %v90, %v91
    %v93 = vmax.f32 %v92, 0.0
    %95 = vset.pattern.permute.xlu0 127
    %96 = vperm.xlu0 %95, %v89
    %v97 = vpop.permute.xlu0 %96
    %v99 = vsub.f32 %v83, %v97
    %v100 = vadd.f32 %v93, 1e-05
    %v101 = vrsqrt.pop %v100
    %v102 = vmul.f32 %v101, %v100
    %v103 = vmul.f32 %v102, %v101
    %v104 = vmul.f32 0.5, %v103
    %v105 = vsub.f32 1.5, %v104
    %v106 = vmul.f32 %v101, %v105
    %vm107 = vweird.f32 %v100
    %vm108 = vweird.f32 %v101
    %vm109 = vmor %vm107, %vm108
    %v110 = vsel %vm109, %v101, %v106
    %112 = vset.pattern.permute.xlu0 127
    %113 = vperm.xlu0 %112, %v110
    %v114 = vpop.permute.xlu0 %113
    %v116 = vmul.f32 %v99, %v114
    %v117 = vld [vmem:[#allocation4 + $0x1] sm:$0x1]
    %v118 = vperm.slane %v117, 0
    %v119 = vmul.f32 %v116, %v118
    %v120 = vld [vmem:[#allocation4 + $0x2] sm:$0x1]
    %v121 = vperm.slane %v120, 0
    %v122 = vadd.f32 %v119, %v121
    %v123 = vmax.f32 %v122, 0.0
    %s124 = scalar_lea.vmem [#allocation2], 128
    %v125 = vld [vmem:[%s124] sm:$0xff]
    %v126 = vld [vmem:[%s124 + $0x8] sm:$0xff]
    %v127 = vld [vmem:[%s124 + $0x10] sm:$0xff]
    %v128 = vld [vmem:[%s124 + $0x18] sm:$0xff]
    %v129 = vld [vmem:[%s124 + $0x20] sm:$0xff]
    %v130 = vld [vmem:[%s124 + $0x28] sm:$0xff]
    %v131 = vld [vmem:[%s124 + $0x30] sm:$0xff]
    %v132 = vld [vmem:[%s124 + $0x38] sm:$0xff]
    %v133 = vld [vmem:[%s124 + $0x40] sm:$0xff]
    %v134 = vld [vmem:[%s124 + $0x48] sm:$0xff]
    %v135 = vld [vmem:[%s124 + $0x50] sm:$0xff]
    %v136 = vld [vmem:[%s124 + $0x58] sm:$0xff]
    %v137 = vld [vmem:[%s124 + $0x60] sm:$0xff]
    %v138 = vld [vmem:[%s124 + $0x68] sm:$0xff]
    %v139 = vld [vmem:[%s124 + $0x70] sm:$0xff]
    %v140 = vld [vmem:[%s124 + $0x78] sm:$0xff]
    %s141 = scalar_lea.vmem [#allocation4], 8
    %v142 = vld [vmem:[%s141] sm:$0x1]
    %v143 = vperm.slane %v142, 0
    %144 = vmatpush.msra.mxu0 %v140
    %145 = vmatpush.msra.mxu0 %v139
    %146 = vmatpush.msra.mxu0 %v138
    %147 = vmatpush.msra.mxu0 %v137
    %148 = vmatpush.msra.mxu0 %v136
    %149 = vmatpush.msra.mxu0 %v135
    %150 = vmatpush.msra.mxu0 %v134
    %151 = vmatpush.msra.mxu0 %v133
    %152 = vmatpush.msra.mxu0 %v132
    %153 = vmatpush.msra.mxu0 %v131
    %154 = vmatpush.msra.mxu0 %v130
    %155 = vmatpush.msra.mxu0 %v129
    %156 = vmatpush.msra.mxu0 %v128
    %157 = vmatpush.msra.mxu0 %v127
    %158 = vmatpush.msra.mxu0 %v126
    %159 = vmatpush.msra.mxu0 %v125
    %160 = vmatmul.f32.gmra.mxu0 %v123
    %v161 = vpop.f32.mrf.mxu0
    %v162 = vadd.f32 %v143, %v161
    %163 = vdwg.mxu0
    %v164 = vmul.f32 %v162, %v162
    %165 = vadd.xlane.f32.xlu0 %v164
    %v166 = vpop.xlane.xlu0 %165
    %v167 = vsub.f32 %v166, %v164
    %v168 = vmul.f32 %v162, 0.01
    %v169 = vmul.f32 %v167, 0.01
    %v170 = vmul.f32 %v168, %v168
    %v171 = vsub.f32 %v169, %v170
    %v172 = vmax.f32 %v171, 0.0
    %174 = vset.pattern.permute.xlu0 127
    %175 = vperm.xlu0 %174, %v168
    %v176 = vpop.permute.xlu0 %175
    %v178 = vsub.f32 %v162, %v176
    %v179 = vadd.f32 %v172, 1e-05
    %v180 = vrsqrt.pop %v179
    %v181 = vmul.f32 %v180, %v179
    %v182 = vmul.f32 %v181, %v180
    %v183 = vmul.f32 0.5, %v182
    %v184 = vsub.f32 1.5, %v183
    %v185 = vmul.f32 %v180, %v184
    %vm186 = vweird.f32 %v179
    %vm187 = vweird.f32 %v180
    %vm188 = vmor %vm186, %vm187
    %v189 = vsel %vm188, %v180, %v185
    %191 = vset.pattern.permute.xlu0 127
    %192 = vperm.xlu0 %191, %v189
    %v193 = vpop.permute.xlu0 %192
    %v195 = vmul.f32 %v178, %v193
    %v196 = vld [vmem:[%s141 + $0x1] sm:$0x1]
    %v197 = vperm.slane %v196, 0
    %v198 = vmul.f32 %v195, %v197
    %v199 = vld [vmem:[%s141 + $0x2] sm:$0x1]
    %v200 = vperm.slane %v199, 0
    %v201 = vadd.f32 %v198, %v200
    %v202 = vmax.f32 %v201, 0.0
    %s203 = scalar_lea.vmem [#allocation2], 256
    %v204 = vld [vmem:[%s203] sm:$0xff]
    %v205 = vld [vmem:[%s203 + $0x8] sm:$0xff]
    %v206 = vld [vmem:[%s203 + $0x10] sm:$0xff]
    %v207 = vld [vmem:[%s203 + $0x18] sm:$0xff]
    %v208 = vld [vmem:[%s203 + $0x20] sm:$0xff]
    %v209 = vld [vmem:[%s203 + $0x28] sm:$0xff]
    %v210 = vld [vmem:[%s203 + $0x30] sm:$0xff]
    %v211 = vld [vmem:[%s203 + $0x38] sm:$0xff]
    %v212 = vld [vmem:[%s203 + $0x40] sm:$0xff]
    %v213 = vld [vmem:[%s203 + $0x48] sm:$0xff]
    %v214 = vld [vmem:[%s203 + $0x50] sm:$0xff]
    %v215 = vld [vmem:[%s203 + $0x58] sm:$0xff]
    %v216 = vld [vmem:[%s203 + $0x60] sm:$0xff]
    %v217 = vld [vmem:[%s203 + $0x68] sm:$0xff]
    %v218 = vld [vmem:[%s203 + $0x70] sm:$0xff]
    %v219 = vld [vmem:[%s203 + $0x78] sm:$0xff]
    %s220 = scalar_lea.vmem [#allocation4], 16
    %v221 = vld [vmem:[%s220] sm:$0x1]
    %v222 = vperm.slane %v221, 0
    %223 = vmatpush.msra.mxu0 %v219
    %224 = vmatpush.msra.mxu0 %v218
    %225 = vmatpush.msra.mxu0 %v217
    %226 = vmatpush.msra.mxu0 %v216
    %227 = vmatpush.msra.mxu0 %v215
    %228 = vmatpush.msra.mxu0 %v214
    %229 = vmatpush.msra.mxu0 %v213
    %230 = vmatpush.msra.mxu0 %v212
    %231 = vmatpush.msra.mxu0 %v211
    %232 = vmatpush.msra.mxu0 %v210
    %233 = vmatpush.msra.mxu0 %v209
    %234 = vmatpush.msra.mxu0 %v208
    %235 = vmatpush.msra.mxu0 %v207
    %236 = vmatpush.msra.mxu0 %v206
    %237 = vmatpush.msra.mxu0 %v205
    %238 = vmatpush.msra.mxu0 %v204
    %239 = vmatmul.f32.gmra.mxu0 %v202
    %v240 = vpop.f32.mrf.mxu0
    %v241 = vadd.f32 %v222, %v240
    %242 = vdwg.mxu0
    %v243 = vmul.f32 %v241, %v241
    %244 = vadd.xlane.f32.xlu0 %v243
    %v245 = vpop.xlane.xlu0 %244
    %v246 = vsub.f32 %v245, %v243
    %v247 = vmul.f32 %v241, 0.01
    %v248 = vmul.f32 %v246, 0.01
    %v249 = vmul.f32 %v247, %v247
    %v250 = vsub.f32 %v248, %v249
    %v251 = vmax.f32 %v250, 0.0
    %253 = vset.pattern.permute.xlu0 127
    %254 = vperm.xlu0 %253, %v247
    %v255 = vpop.permute.xlu0 %254
    %v257 = vsub.f32 %v241, %v255
    %v258 = vadd.f32 %v251, 1e-05
    %v259 = vrsqrt.pop %v258
    %v260 = vmul.f32 %v259, %v258
    %v261 = vmul.f32 %v260, %v259
    %v262 = vmul.f32 0.5, %v261
    %v263 = vsub.f32 1.5, %v262
    %v264 = vmul.f32 %v259, %v263
    %vm265 = vweird.f32 %v258
    %vm266 = vweird.f32 %v259
    %vm267 = vmor %vm265, %vm266
    %v268 = vsel %vm267, %v259, %v264
    %270 = vset.pattern.permute.xlu0 127
    %271 = vperm.xlu0 %270, %v268
    %v272 = vpop.permute.xlu0 %271
    %v274 = vmul.f32 %v257, %v272
    %v275 = vld [vmem:[%s220 + $0x1] sm:$0x1]
    %v276 = vperm.slane %v275, 0
    %v277 = vmul.f32 %v274, %v276
    %v278 = vld [vmem:[%s220 + $0x2] sm:$0x1]
    %v279 = vperm.slane %v278, 0
    %v280 = vadd.f32 %v277, %v279
    %v281 = vmax.f32 %v280, 0.0
    %s282 = scalar_lea.vmem [#allocation2], 384
    %v283 = vld [vmem:[%s282] sm:$0xff]
    %v284 = vld [vmem:[%s282 + $0x8] sm:$0xff]
    %v285 = vld [vmem:[%s282 + $0x10] sm:$0xff]
    %v286 = vld [vmem:[%s282 + $0x18] sm:$0xff]
    %v287 = vld [vmem:[%s282 + $0x20] sm:$0xff]
    %v288 = vld [vmem:[%s282 + $0x28] sm:$0xff]
    %v289 = vld [vmem:[%s282 + $0x30] sm:$0xff]
    %v290 = vld [vmem:[%s282 + $0x38] sm:$0xff]
    %v291 = vld [vmem:[%s282 + $0x40] sm:$0xff]
    %v292 = vld [vmem:[%s282 + $0x48] sm:$0xff]
    %v293 = vld [vmem:[%s282 + $0x50] sm:$0xff]
    %v294 = vld [vmem:[%s282 + $0x58] sm:$0xff]
    %v295 = vld [vmem:[%s282 + $0x60] sm:$0xff]
    %v296 = vld [vmem:[%s282 + $0x68] sm:$0xff]
    %v297 = vld [vmem:[%s282 + $0x70] sm:$0xff]
    %v298 = vld [vmem:[%s282 + $0x78] sm:$0xff]
    %s299 = scalar_lea.vmem [#allocation4], 24
    %v300 = vld [vmem:[%s299] sm:$0x1]
    %v301 = vperm.slane %v300, 0
    %302 = vmatpush.msra.mxu0 %v298
    %303 = vmatpush.msra.mxu0 %v297
    %304 = vmatpush.msra.mxu0 %v296
    %305 = vmatpush.msra.mxu0 %v295
    %306 = vmatpush.msra.mxu0 %v294
    %307 = vmatpush.msra.mxu0 %v293
    %308 = vmatpush.msra.mxu0 %v292
    %309 = vmatpush.msra.mxu0 %v291
    %310 = vmatpush.msra.mxu0 %v290
    %311 = vmatpush.msra.mxu0 %v289
    %312 = vmatpush.msra.mxu0 %v288
    %313 = vmatpush.msra.mxu0 %v287
    %314 = vmatpush.msra.mxu0 %v286
    %315 = vmatpush.msra.mxu0 %v285
    %316 = vmatpush.msra.mxu0 %v284
    %317 = vmatpush.msra.mxu0 %v283
    %318 = vmatmul.f32.gmra.mxu0 %v281
    %v319 = vpop.f32.mrf.mxu0
    %v320 = vadd.f32 %v301, %v319
    %321 = vdwg.mxu0
    %v322 = vmul.f32 %v320, %v320
    %323 = vadd.xlane.f32.xlu0 %v322
    %v324 = vpop.xlane.xlu0 %323
    %v325 = vsub.f32 %v324, %v322
    %v326 = vmul.f32 %v320, 0.02
    %v327 = vmul.f32 %v325, 0.02
    %v328 = vmul.f32 %v326, %v326
    %v329 = vsub.f32 %v327, %v328
    %v330 = vmax.f32 %v329, 0.0
    %332 = vset.pattern.permute.xlu0 127
    %333 = vperm.xlu0 %332, %v326
    %v334 = vpop.permute.xlu0 %333
    %v336 = vsub.f32 %v320, %v334
    %v337 = vadd.f32 %v330, 1e-05
    %v338 = vrsqrt.pop %v337
    %v339 = vmul.f32 %v338, %v337
    %v340 = vmul.f32 %v339, %v338
    %v341 = vmul.f32 0.5, %v340
    %v342 = vsub.f32 1.5, %v341
    %v343 = vmul.f32 %v338, %v342
    %vm344 = vweird.f32 %v337
    %vm345 = vweird.f32 %v338
    %vm346 = vmor %vm344, %vm345
    %v347 = vsel %vm346, %v338, %v343
    %349 = vset.pattern.permute.xlu0 127
    %350 = vperm.xlu0 %349, %v347
    %v351 = vpop.permute.xlu0 %350
    %v353 = vmul.f32 %v336, %v351
    %v354 = vld [vmem:[%s299 + $0x1] sm:$0x1]
    %v355 = vperm.slane %v354, 0
    %v356 = vmul.f32 %v353, %v355
    %v357 = vld [vmem:[%s299 + $0x2] sm:$0x1]
    %v358 = vperm.slane %v357, 0
    %v359 = vadd.f32 %v356, %v358
    %v360 = vmax.f32 %v359, 0.0
    %s361 = scalar_lea.vmem [#allocation2], 512
    %v362 = vld [vmem:[%s361] sm:$0xff]
    %v363 = vld [vmem:[%s361 + $0x8] sm:$0xff]
    %v364 = vld [vmem:[%s361 + $0x10] sm:$0xff]
    %v365 = vld [vmem:[%s361 + $0x18] sm:$0xff]
    %v366 = vld [vmem:[%s361 + $0x20] sm:$0xff]
    %v367 = vld [vmem:[%s361 + $0x28] sm:$0xff]
    %v368 = vld [vmem:[%s361 + $0x30] sm:$0xff]
    %v369 = vld [vmem:[%s361 + $0x38] sm:$0xff]
    %v370 = vld [vmem:[%s361 + $0x40] sm:$0xff]
    %v371 = vld [vmem:[%s361 + $0x48] sm:$0xff]
    %v372 = vld [vmem:[%s361 + $0x50] sm:$0xff]
    %v373 = vld [vmem:[%s361 + $0x58] sm:$0xff]
    %v374 = vld [vmem:[%s361 + $0x60] sm:$0xff]
    %v375 = vld [vmem:[%s361 + $0x68] sm:$0xff]
    %v376 = vld [vmem:[%s361 + $0x70] sm:$0xff]
    %v377 = vld [vmem:[%s361 + $0x78] sm:$0xff]
    %s378 = scalar_lea.vmem [#allocation4], 32
    %v379 = vld [vmem:[%s378] sm:$0x1]
    %v380 = vperm.slane %v379, 0
    %381 = vmatpush.msra.mxu0 %v377
    %382 = vmatpush.msra.mxu0 %v376
    %383 = vmatpush.msra.mxu0 %v375
    %384 = vmatpush.msra.mxu0 %v374
    %385 = vmatpush.msra.mxu0 %v373
    %386 = vmatpush.msra.mxu0 %v372
    %387 = vmatpush.msra.mxu0 %v371
    %388 = vmatpush.msra.mxu0 %v370
    %389 = vmatpush.msra.mxu0 %v369
    %390 = vmatpush.msra.mxu0 %v368
    %391 = vmatpush.msra.mxu0 %v367
    %392 = vmatpush.msra.mxu0 %v366
    %393 = vmatpush.msra.mxu0 %v365
    %394 = vmatpush.msra.mxu0 %v364
    %395 = vmatpush.msra.mxu0 %v363
    %396 = vmatpush.msra.mxu0 %v362
    %397 = vmatmul.f32.gmra.mxu0 %v360
    %v398 = vpop.f32.mrf.mxu0
    %v399 = vadd.f32 %v380, %v398
    %400 = vdwg.mxu0
    %v401 = vmul.f32 %v399, %v399
    %402 = vadd.xlane.f32.xlu0 %v401
    %v403 = vpop.xlane.xlu0 %402
    %v404 = vsub.f32 %v403, %v401
    %v405 = vmul.f32 %v399, 0.25
    %v406 = vmul.f32 %v404, 0.25
    %v407 = vmul.f32 %v405, %v405
    %v408 = vsub.f32 %v406, %v407
    %v409 = vmax.f32 %v408, 0.0
    %411 = vset.pattern.permute.xlu0 127
    %412 = vperm.xlu0 %411, %v405
    %v413 = vpop.permute.xlu0 %412
    %v415 = vsub.f32 %v399, %v413
    %v416 = vadd.f32 %v409, 1e-05
    %v417 = vrsqrt.pop %v416
    %v418 = vmul.f32 %v417, %v416
    %v419 = vmul.f32 %v418, %v417
    %v420 = vmul.f32 0.5, %v419
    %v421 = vsub.f32 1.5, %v420
    %v422 = vmul.f32 %v417, %v421
    %vm423 = vweird.f32 %v416
    %vm424 = vweird.f32 %v417
    %vm425 = vmor %vm423, %vm424
    %v426 = vsel %vm425, %v417, %v422
    %428 = vset.pattern.permute.xlu0 127
    %429 = vperm.xlu0 %428, %v426
    %v430 = vpop.permute.xlu0 %429
    %v432 = vmul.f32 %v415, %v430
    %v433 = vld [vmem:[%s378 + $0x1] sm:$0x1]
    %v434 = vperm.slane %v433, 0
    %v435 = vmul.f32 %v432, %v434
    %v436 = vld [vmem:[%s378 + $0x2] sm:$0x1]
    %v437 = vperm.slane %v436, 0
    %v438 = vadd.f32 %v435, %v437
    %v439 = vtanh.pop %v438
    %440 = vst [vmem:[%s3] sm:$0xff] %v439
    // Predicated region
    $region22: #{actor_forward.1} parent=1 // pred_check
      _
    $region23: #{actor_forward.1} parent=1 // pred_check_branch
      %442 = sbr.rel (0) target = $region25
    $region24: #{actor_forward.1} parent=1 // pred_region
      _
    $region25: #{actor_forward.1} parent=1 // pred_fallthru
      _
    // Predicated region
    $region26: #{actor_forward.1} parent=1 // pred_check
      _
    $region27: #{actor_forward.1} parent=1 // pred_check_branch
      %444 = sbr.rel (0) target = $region29
    $region28: #{actor_forward.1} parent=1 // pred_region
      _
    $region29: #{actor_forward.1} parent=1 // pred_fallthru
      _
    %445 = vsyncpa [#allocation3], 1
    %446 = vsyncpa [#allocation5], 1

</llo_original>
